<compile_context>
chip_gen: v7x
topology: tpu7x:2x2x1
jax: 0.10.0
libtpu: 0.0.40
codegen_flags: <defaults>
</compile_context>

<pallas_src>
import jax
import jax.numpy as jnp
from jax.experimental import pallas as pl
from jax.experimental.pallas import tpu as pltpu


def _adapter_kernel(x_ref, w1t_ref, w2t_ref, o_ref):
    # x_ref:   (TM, c_in)       VMEM  (one batch tile)
    # w1t_ref: (c_in, hidden)   VMEM  (= W1.T, resident across grid steps)
    # w2t_ref: (hidden, c_in)   VMEM  (= W2.T, resident across grid steps)
    # o_ref:   (TM, c_in)       VMEM
    x = x_ref[...]
    h = jnp.dot(x, w1t_ref[...], preferred_element_type=jnp.float32)
    h = jnp.maximum(h, 0.0)                       # ReLU
    h = h.astype(w2t_ref.dtype)                   # identity for f32 weights
    y = jnp.dot(h, w2t_ref[...], preferred_element_type=jnp.float32)
    y = jnp.maximum(y, 0.0)                       # ReLU
    o_ref[...] = y.astype(o_ref.dtype)


def prepare_adapter_weights(w1, w2, compute_dtype=None):
    """One-time weight prep (do this at model init/load, not per forward).

    w1: (hidden, c_in)  PyTorch nn.Linear layout  -> returns w1t: (c_in, hidden)
    w2: (c_in, hidden)  PyTorch nn.Linear layout  -> returns w2t: (hidden, c_in)
    """
    w1 = jnp.asarray(w1)
    w2 = jnp.asarray(w2)
    if compute_dtype is not None:
        w1 = w1.astype(compute_dtype)
        w2 = w2.astype(compute_dtype)
    return w1.T, w2.T


def clip_adapter(x, w1t, w2t, *, tm_cap=1024, vmem_limit_bytes=None):
    """Fused CLIP_Adapter forward.

    x:   (..., c_in)
    w1t: (c_in, hidden)   -- pre-transposed (see prepare_adapter_weights)
    w2t: (hidden, c_in)
    """
    orig_shape = x.shape
    c_in = orig_shape[-1]
    hidden = w1t.shape[1]
    assert w1t.shape == (c_in, hidden) and w2t.shape == (hidden, c_in)

    # Single compute dtype (supports bf16 weights / f32 activations etc.).
    compute_dtype = jnp.promote_types(x.dtype, w1t.dtype)
    x2d = x.reshape(-1, c_in).astype(compute_dtype)
    w1t = w1t.astype(compute_dtype)
    w2t = w2t.astype(compute_dtype)

    b = x2d.shape[0]

    # Batch tile: multiple of 8 (sublane), capped so the working set fits the
    # smallest VMEM target (v7x, 64 MiB physical).
    tm = min(int(tm_cap), max(8, b))
    tm = max(8, (tm // 8) * 8)
    b_pad = pl.cdiv(b, tm) * tm
    if b_pad != b:
        x2d = jnp.pad(x2d, ((0, b_pad - b), (0, 0)))
    grid = (b_pad // tm,)

    itemsize = jnp.dtype(compute_dtype).itemsize
    tile_bytes = tm * c_in * itemsize                       # one x (or out) tile
    w_bytes = (w1t.size + w2t.size) * itemsize
    if vmem_limit_bytes is None:
        # double-buffered in + out tiles, resident weights, + headroom,
        # clamped to v7x's 64 MiB physical VMEM.
        vmem_limit_bytes = min(64 * 1024 * 1024,
                               max(32 * 1024 * 1024,
                                   4 * tile_bytes + w_bytes + (8 << 20)))

    cost = pl.CostEstimate(
        flops=4 * b_pad * c_in * hidden,                    # two matmuls
        transcendentals=0,
        bytes_accessed=2 * b_pad * c_in * itemsize + w_bytes,
    )

    out = pl.pallas_call(
        _adapter_kernel,
        out_shape=jax.ShapeDtypeStruct((b_pad, c_in), x.dtype),
        grid_spec=pltpu.PrefetchScalarGridSpec(
            num_scalar_prefetch=0,
            grid=grid,
            in_specs=[
                pl.BlockSpec((tm, c_in), lambda i: (i, 0)),      # batch-tiled x
                pl.BlockSpec(w1t.shape, lambda i: (0, 0)),       # resident W1^T
                pl.BlockSpec(w2t.shape, lambda i: (0, 0)),       # resident W2^T
            ],
            out_specs=pl.BlockSpec((tm, c_in), lambda i: (i, 0)),
        ),
        compiler_params=pltpu.CompilerParams(
            dimension_semantics=("parallel",),                   # megacore-friendly
            vmem_limit_bytes=int(vmem_limit_bytes),
        ),
        cost_estimate=cost,
    )(x2d, w1t, w2t)

    if b_pad != b:
        out = out[:b]
    return out.reshape(orig_shape)


def _reference(x, w1, w2):
    h = jnp.maximum(x @ w1.T, 0.0)
    return jnp.maximum(h @ w2.T, 0.0)


if __name__ == "__main__":
    key = jax.random.PRNGKey(0)
    c_in = 32
    reduction = 4
    hidden = c_in // reduction
    batch, seq = 2, 4                     # x flattened to 8 rows in the wrapper

    kx, k1, k2 = jax.random.split(key, 3)
    x = jax.random.normal(kx, (batch, seq, c_in), dtype=jnp.float32)
    # PyTorch nn.Linear layout: (out_features, in_features).
    w1 = jax.random.normal(k1, (hidden, c_in), dtype=jnp.float32) * 0.1
    w2 = jax.random.normal(k2, (c_in, hidden), dtype=jnp.float32) * 0.1

    # One-time weight prep (transpose hoisted out of the forward path).
    w1t, w2t = prepare_adapter_weights(w1, w2)

    y = clip_adapter(x, w1t, w2t)
    jax.block_until_ready(y)

    y_ref = _reference(x, w1, w2)
    assert y.shape == x.shape
    assert jnp.allclose(y, y_ref, atol=1e-5, rtol=1e-5), "mismatch vs reference"

    print("KERNEL_OK")
</pallas_src>

<mosaic_0001>
module attributes {stable_mosaic.version = 11 : i64} {
  func.func @_adapter_kernel(%arg0: i32, %arg1: memref<8x32xf32, #tpu.memory_space<vmem>>, %arg2: memref<32x8xf32, #tpu.memory_space<vmem>>, %arg3: memref<8x32xf32, #tpu.memory_space<vmem>>, %arg4: memref<8x32xf32, #tpu.memory_space<vmem>>) attributes {dimension_semantics = [#tpu.dimension_semantics<parallel>], iteration_bounds = array<i64: 1>, scalar_prefetch = 0 : i64, scratch_operands = 0 : i64, tpu.core_type = #tpu.core_type<tc>, window_params = [{transform_indices = @transform_0, window_bounds = array<i64: 8, 32>}, {pipeline_mode = #tpu.pipeline_mode<synchronous>, transform_indices = @transform_1, window_bounds = array<i64: 32, 8>}, {pipeline_mode = #tpu.pipeline_mode<synchronous>, transform_indices = @transform_2, window_bounds = array<i64: 8, 32>}, {transform_indices = @transform_3, window_bounds = array<i64: 8, 32>}]} {
    %c0 = arith.constant 0 : index
    %c0_0 = arith.constant 0 : index
    %0 = vector.load %arg1[%c0, %c0_0] : memref<8x32xf32, #tpu.memory_space<vmem>>, vector<8x32xf32>
    %c0_1 = arith.constant 0 : index
    %c0_2 = arith.constant 0 : index
    %1 = vector.load %arg2[%c0_1, %c0_2] : memref<32x8xf32, #tpu.memory_space<vmem>>, vector<32x8xf32>
    %cst = arith.constant dense<0.000000e+00> : vector<8x8xf32>
    %2 = tpu.matmul %0, %1, %cst {dimension_numbers = #tpu.dot_dimension_numbers<[1], [0], [0], [1], [0, 0, 1, 1], [], []>} : vector<8x32xf32>, vector<32x8xf32>, vector<8x8xf32> -> vector<8x8xf32>
    %cst_3 = arith.constant 0.000000e+00 : f32
    %3 = vector.broadcast %cst_3 : f32 to vector<8x8xf32>
    %4 = arith.maximumf %2, %3 : vector<8x8xf32>
    %c0_4 = arith.constant 0 : index
    %c0_5 = arith.constant 0 : index
    %5 = vector.load %arg3[%c0_4, %c0_5] : memref<8x32xf32, #tpu.memory_space<vmem>>, vector<8x32xf32>
    %cst_6 = arith.constant dense<0.000000e+00> : vector<8x32xf32>
    %6 = tpu.matmul %4, %5, %cst_6 {dimension_numbers = #tpu.dot_dimension_numbers<[1], [0], [0], [1], [0, 0, 1, 1], [], []>} : vector<8x8xf32>, vector<8x32xf32>, vector<8x32xf32> -> vector<8x32xf32>
    %cst_7 = arith.constant 0.000000e+00 : f32
    %7 = vector.broadcast %cst_7 : f32 to vector<8x32xf32>
    %8 = arith.maximumf %6, %7 : vector<8x32xf32>
    %c0_8 = arith.constant 0 : index
    %c0_9 = arith.constant 0 : index
    %9 = vector.load %arg4[%c0_8, %c0_9] : memref<8x32xf32, #tpu.memory_space<vmem>>, vector<8x32xf32>
    tpu.vector_store %arg4[%c0_8, %c0_9], %8 {strides = array<i32>} : memref<8x32xf32, #tpu.memory_space<vmem>>, vector<8x32xf32>,
    return
  }
  func.func @transform_0(%arg0: i32) -> (i32, i32) {
    %c0_i32 = arith.constant 0 : i32
    %c0_i32_0 = arith.constant 0 : i32
    return %arg0, %c0_i32 : i32, i32
  }
  func.func @transform_1(%arg0: i32) -> (i32, i32) {
    %c0_i32 = arith.constant 0 : i32
    %c0_i32_0 = arith.constant 0 : i32
    %c0_i32_1 = arith.constant 0 : i32
    return %c0_i32, %c0_i32_0 : i32, i32
  }
  func.func @transform_2(%arg0: i32) -> (i32, i32) {
    %c0_i32 = arith.constant 0 : i32
    %c0_i32_0 = arith.constant 0 : i32
    %c0_i32_1 = arith.constant 0 : i32
    return %c0_i32, %c0_i32_0 : i32, i32
  }
  func.func @transform_3(%arg0: i32) -> (i32, i32) {
    %c0_i32 = arith.constant 0 : i32
    %c0_i32_0 = arith.constant 0 : i32
    return %arg0, %c0_i32 : i32, i32
  }
}

</mosaic_0001>

<llo_original>
// kernel: tpu_custom_call.1
$region0: #{tpu_custom_call.1}
  #allocation0 [shape = 'u32[]', space=smem, size = 0x4, offset = 0x4, fixed_abs, tag = 'smem constant byte address 0x4 - core index']
  #allocation1 [shape = 'u32[144,128]{1,0:T(1,128)}', space=vmem, size = 0x12000, scoped, tag = 'internal scratch']
  %s0 = inlined_call_operand.vmem [shape: f32[8,32], index: 0, kind: input, shape index: {}]
  %s1 = inlined_call_operand.vmem [shape: f32[32,8], index: 1, kind: input, shape index: {}]
  %s2 = inlined_call_operand.vmem [shape: f32[8,32], index: 2, kind: input, shape index: {}]
  %s3 = inlined_call_operand.hbm [shape: f32[8,32], index: 3, kind: output, shape index: {}]
  %s4 = sld [smem:[#allocation0]]
  $region22: #{tpu_custom_call.1} parent=0
    _
  %s6 = ssub.s32 1, %s4
  %s7 = scalar_select 0, %s6, %s4
  $region1: #{tpu_custom_call.1} parent=0
    #allocation2 [shape = 'u8[4096]{0}', space=vmem, size = 0x1000, scoped, tag = 'output window, operand 0, single buffered']
    #allocation3 [shape = 's32[1]{0}', space=sflag, size = 0x4, scoped, tag = 'scoped memory for tpu_custom_call.1']
    %8 = vsyncpa [#allocation3], 0
    // Predicated region
    $region2: #{tpu_custom_call.1} parent=1 // pred_check
      _
    $region3: #{tpu_custom_call.1} parent=1 // pred_check_branch
      %10 = sbr.rel (0) target = $region5
    $region4: #{tpu_custom_call.1} parent=1 // pred_region
      _
    $region5: #{tpu_custom_call.1} parent=1 // pred_fallthru
      _
    // Predicated region
    $region6: #{tpu_custom_call.1} parent=1 // pred_check
      _
    $region7: #{tpu_custom_call.1} parent=1 // pred_check_branch
      %12 = sbr.rel (0) target = $region9
    $region8: #{tpu_custom_call.1} parent=1 // pred_region
      _
    $region9: #{tpu_custom_call.1} parent=1 // pred_fallthru
      _
    // Predicated region
    $region10: #{tpu_custom_call.1} parent=1 // pred_check
      _
    $region11: #{tpu_custom_call.1} parent=1 // pred_check_branch
      %14 = sbr.rel (0) target = $region13
    $region12: #{tpu_custom_call.1} parent=1 // pred_region
      _
    $region13: #{tpu_custom_call.1} parent=1 // pred_fallthru
      _
    %v15 = vld [vmem:[%s0] sm:$0xff]
    %v16 = vld [vmem:[%s1] sm:$0xff]
    %v17 = vld [vmem:[%s1 + $0x8] sm:$0xff]
    %v18 = vld [vmem:[%s1 + $0x10] sm:$0xff]
    %v19 = vld [vmem:[%s1 + $0x18] sm:$0xff]
    %vm20 = vcmask 261120
    %v22 = vsel %vm20, %v15, 0
    %24 = vmatprep.subr.mxu0 0.0
    %25 = vmatpush1.msra.mxu0 %v16
    %26 = vmatprep.subr.mxu0 0.0
    %27 = vmatpush1.msra.mxu0 %v17
    %28 = vmatprep.subr.mxu0 0.0
    %29 = vmatpush1.msra.mxu0 %v18
    %30 = vmatprep.subr.mxu0 0.0
    %31 = vmatpush1.msra.mxu0 %v19
    %32 = vmatprep.subr.mxu0 0.0
    %33 = vmatpush1.msra.mxu0 0.0
    %34 = vmatprep.subr.mxu0 0.0
    %35 = vmatpush1.msra.mxu0 0.0
    %36 = vmatprep.subr.mxu0 0.0
    %37 = vmatpush1.msra.mxu0 0.0
    %38 = vmatprep.subr.mxu0 0.0
    %39 = vmatpush1.msra.mxu0 0.0
    %40 = vmatprep.subr.mxu0 0.0
    %41 = vmatpush1.msra.mxu0 0.0
    %42 = vmatprep.subr.mxu0 0.0
    %43 = vmatpush1.msra.mxu0 0.0
    %44 = vmatprep.subr.mxu0 0.0
    %45 = vmatpush1.msra.mxu0 0.0
    %46 = vmatprep.subr.mxu0 0.0
    %47 = vmatpush1.msra.mxu0 0.0
    %48 = vmatprep.subr.mxu0 0.0
    %49 = vmatpush1.msra.mxu0 0.0
    %50 = vmatprep.subr.mxu0 0.0
    %51 = vmatpush1.msra.mxu0 0.0
    %52 = vmatprep.subr.mxu0 0.0
    %53 = vmatpush1.msra.mxu0 0.0
    %54 = vmatprep.subr.mxu0 0.0
    %55 = vmatpush1.msra.mxu0 0.0
    %56 = vmatprep.subr.mxu0 0.0
    %57 = vmatpush1.msra.mxu0 0.0
    %58 = vmatprep.subr.mxu0 0.0
    %59 = vmatpush1.msra.mxu0 0.0
    %60 = vmatprep.subr.mxu0 0.0
    %61 = vmatpush1.msra.mxu0 0.0
    %62 = vmatprep.subr.mxu0 0.0
    %63 = vmatpush1.msra.mxu0 0.0
    %64 = vmatprep.subr.mxu0 0.0
    %65 = vmatpush1.msra.mxu0 0.0
    %66 = vmatprep.subr.mxu0 0.0
    %67 = vmatpush1.msra.mxu0 0.0
    %68 = vmatprep.subr.mxu0 0.0
    %69 = vmatpush1.msra.mxu0 0.0
    %70 = vmatprep.subr.mxu0 0.0
    %71 = vmatpush1.msra.mxu0 0.0
    %72 = vmatprep.subr.mxu0 0.0
    %73 = vmatpush1.msra.mxu0 0.0
    %74 = vmatprep.subr.mxu0 0.0
    %75 = vmatpush1.msra.mxu0 0.0
    %76 = vmatprep.subr.mxu0 0.0
    %77 = vmatpush1.msra.mxu0 0.0
    %78 = vmatprep.subr.mxu0 0.0
    %79 = vmatpush1.msra.mxu0 0.0
    %80 = vmatprep.subr.mxu0 0.0
    %81 = vmatpush1.msra.mxu0 0.0
    %82 = vmatprep.subr.mxu0 0.0
    %83 = vmatpush1.msra.mxu0 0.0
    %84 = vmatprep.subr.mxu0 0.0
    %85 = vmatpush1.msra.mxu0 0.0
    %86 = vmatprep.subr.mxu0 0.0
    %87 = vmatpush1.msra.mxu0 0.0
    %88 = vmatprep.mubr.f32.mxu0 0.0
    %89 = vmatmul.mubr.f32.gmra.mrb[0].mxu0 %v22
    %v90 = vpop.f32.mrb[0].mxu0
    %v91 = vadd.f32 0.0, %v90
    %v92 = vpop.f32.mrb[0].mxu0
    %93 = vdwg.mxu0
    %v94 = vmax.f32 %v91, 0.0
    %v95 = vld [vmem:[%s2] sm:$0xff]
    %vm96 = vcmask 64512
    %v98 = vsel %vm96, %v94, 0
    %100 = vmatprep.subr.mxu0 0.0
    %101 = vmatpush1.msra.mxu0 %v95
    %102 = vmatprep.subr.mxu0 0.0
    %103 = vmatpush1.msra.mxu0 0.0
    %104 = vmatprep.subr.mxu0 0.0
    %105 = vmatpush1.msra.mxu0 0.0
    %106 = vmatprep.subr.mxu0 0.0
    %107 = vmatpush1.msra.mxu0 0.0
    %108 = vmatprep.subr.mxu0 0.0
    %109 = vmatpush1.msra.mxu0 0.0
    %110 = vmatprep.subr.mxu0 0.0
    %111 = vmatpush1.msra.mxu0 0.0
    %112 = vmatprep.subr.mxu0 0.0
    %113 = vmatpush1.msra.mxu0 0.0
    %114 = vmatprep.subr.mxu0 0.0
    %115 = vmatpush1.msra.mxu0 0.0
    %116 = vmatprep.subr.mxu0 0.0
    %117 = vmatpush1.msra.mxu0 0.0
    %118 = vmatprep.subr.mxu0 0.0
    %119 = vmatpush1.msra.mxu0 0.0
    %120 = vmatprep.subr.mxu0 0.0
    %121 = vmatpush1.msra.mxu0 0.0
    %122 = vmatprep.subr.mxu0 0.0
    %123 = vmatpush1.msra.mxu0 0.0
    %124 = vmatprep.subr.mxu0 0.0
    %125 = vmatpush1.msra.mxu0 0.0
    %126 = vmatprep.subr.mxu0 0.0
    %127 = vmatpush1.msra.mxu0 0.0
    %128 = vmatprep.subr.mxu0 0.0
    %129 = vmatpush1.msra.mxu0 0.0
    %130 = vmatprep.subr.mxu0 0.0
    %131 = vmatpush1.msra.mxu0 0.0
    %132 = vmatprep.subr.mxu0 0.0
    %133 = vmatpush1.msra.mxu0 0.0
    %134 = vmatprep.subr.mxu0 0.0
    %135 = vmatpush1.msra.mxu0 0.0
    %136 = vmatprep.subr.mxu0 0.0
    %137 = vmatpush1.msra.mxu0 0.0
    %138 = vmatprep.subr.mxu0 0.0
    %139 = vmatpush1.msra.mxu0 0.0
    %140 = vmatprep.subr.mxu0 0.0
    %141 = vmatpush1.msra.mxu0 0.0
    %142 = vmatprep.subr.mxu0 0.0
    %143 = vmatpush1.msra.mxu0 0.0
    %144 = vmatprep.subr.mxu0 0.0
    %145 = vmatpush1.msra.mxu0 0.0
    %146 = vmatprep.subr.mxu0 0.0
    %147 = vmatpush1.msra.mxu0 0.0
    %148 = vmatprep.subr.mxu0 0.0
    %149 = vmatpush1.msra.mxu0 0.0
    %150 = vmatprep.subr.mxu0 0.0
    %151 = vmatpush1.msra.mxu0 0.0
    %152 = vmatprep.subr.mxu0 0.0
    %153 = vmatpush1.msra.mxu0 0.0
    %154 = vmatprep.subr.mxu0 0.0
    %155 = vmatpush1.msra.mxu0 0.0
    %156 = vmatprep.subr.mxu0 0.0
    %157 = vmatpush1.msra.mxu0 0.0
    %158 = vmatprep.subr.mxu0 0.0
    %159 = vmatpush1.msra.mxu0 0.0
    %160 = vmatprep.subr.mxu0 0.0
    %161 = vmatpush1.msra.mxu0 0.0
    %162 = vmatprep.subr.mxu0 0.0
    %163 = vmatpush1.msra.mxu0 0.0
    %164 = vmatprep.mubr.f32.mxu0 0.0
    %165 = vmatmul.mubr.f32.gmra.mrb[0].mxu0 %v98
    %v166 = vpop.f32.mrb[0].mxu0
    %v167 = vadd.f32 0.0, %v166
    %v168 = vpop.f32.mrb[0].mxu0
    %169 = vdwg.mxu0
    %v170 = vmax.f32 %v167, 0.0
    %171 = vst.msk [vmem:[#allocation2] sm:$0xff] %vm20, %v170
    // Predicated region
    $region14: #{tpu_custom_call.1} parent=1 // pred_check
      _
    $region15: #{tpu_custom_call.1} parent=1 // pred_check_branch
      %173 = sbr.rel (0) target = $region17
    $region16: #{tpu_custom_call.1} parent=1 // pred_region
      %s175 = ssub.s32 128, 128
      %176 = vsyncadd [#allocation3], %s175
      %s178 = sshll.u32 [#allocation2], 4
      %s179 = int_to_ptr.vmem [resolvable:$true] %s178
      %181 = dma.vmem_to_hbm [thread:$0]  %s179, 128, %s3, [#allocation3]
    $region17: #{tpu_custom_call.1} parent=1 // pred_fallthru
      _
    // Predicated region
    $region18: #{tpu_custom_call.1} parent=1 // pred_check
      _
    $region19: #{tpu_custom_call.1} parent=1 // pred_check_branch
      %183 = sbr.rel (0) target = $region21
    $region20: #{tpu_custom_call.1} parent=1 // pred_region
      %184 = dma.done [#allocation3], 128
    $region21: #{tpu_custom_call.1} parent=1 // pred_fallthru
      _
    %185 = vsyncpa [#allocation3], 1

</llo_original>
